<compile_context>
chip_gen: v5e
topology: v5e:2x2
jax: 0.10.0
libtpu: 0.0.40
codegen_flags: <defaults>
</compile_context>

<pallas_src>
import functools
import math

import jax
import jax.numpy as jnp
from jax.experimental import pallas as pl
from jax.experimental.pallas import tpu as pltpu

LANE = 128


def _round_up(x, m):
    return (x + m - 1) // m * m


# --------------------------------------------------------------------------- #
# prep kernel: normalize rows, fold tau, bf16-cast MXU operands, cross term.
# --------------------------------------------------------------------------- #
def _prep_kernel(a_ref, b_ref, a_out_ref, b_out_ref, cross_ref, *,
                 inv_tau, inv_sqrt_tau):
    a = a_ref[...].astype(jnp.float32)
    b = b_ref[...].astype(jnp.float32)
    # rsqrt goes to the EUP slot; eps guard against zero-norm (padded) rows.
    inv_na = jax.lax.rsqrt(jnp.maximum(jnp.sum(a * a, axis=1, keepdims=True),
                                       1e-12))
    inv_nb = jax.lax.rsqrt(jnp.maximum(jnp.sum(b * b, axis=1, keepdims=True),
                                       1e-12))
    a_cap = a * inv_na
    b_cap = b * inv_nb
    # Rows are unit-norm, so CosineSimilarity(cat[a,b], cat[b,a]) row-wise is
    # just dot(a_i, b_i) (identical for both halves).  Keep it in f32.
    cross_ref[...] = jnp.sum(a_cap * b_cap, axis=1, keepdims=True) * inv_tau
    # Fold tau into the MXU operands: (x/sqrt(tau)) . (y/sqrt(tau)) = x.y/tau.
    # bf16 operands feed the MXU at native rate; accumulation stays f32.
    a_out_ref[...] = (a_cap * inv_sqrt_tau).astype(jnp.bfloat16)
    b_out_ref[...] = (b_cap * inv_sqrt_tau).astype(jnp.bfloat16)


# --------------------------------------------------------------------------- #
# main kernel: streamed exp-sum over the (2N, 2N) similarity, per-row losses.
# --------------------------------------------------------------------------- #
def _sim_loss_kernel(rows_ref, cols_ref, cross_ref, out_ref, acc_ref, *,
                     tile, valid_cols):
    i = pl.program_id(0)          # row tile (parallel)
    j = pl.program_id(1)          # col tile (reduction axis, last in grid)

    @pl.when(j == 0)
    def _():
        acc_ref[...] = jnp.zeros_like(acc_ref)

    # (tile, tile) logits block == sim/tau (tau already folded into operands).
    # dot_general contracts dim 1 of both operands: no transpose materialized.
    s = jax.lax.dot_general(rows_ref[...], cols_ref[...],
                            (((1,), (1,)), ((), ())),
                            preferred_element_type=jnp.float32)
    e = jnp.exp(s)

    # Zero the self-similarity (only bites in the diagonal tile i == j) and any
    # zero-padded columns.  cmp/select ride the 4 VALU slots while the EUP exp
    # above is the binding slot, so this per-tile masking is effectively free;
    # no full-matrix iotas or second reduce, no diag subtraction/cancellation.
    rr = jax.lax.broadcasted_iota(jnp.int32, e.shape, 0)
    cc = jax.lax.broadcasted_iota(jnp.int32, e.shape, 1)
    is_diag = jnp.logical_and(i == j, rr == cc)
    is_pad = (j * tile + cc) >= valid_cols
    e = jnp.where(jnp.logical_or(is_diag, is_pad), 0.0, e)

    acc_ref[...] += jnp.sum(e, axis=1, keepdims=True)

    @pl.when(j == pl.num_programs(1) - 1)
    def _():
        # -log(num/den) = log(den) - cross/tau  (one log; no exp/div).
        out_ref[...] = jnp.log(acc_ref[...]) - cross_ref[...]


# --------------------------------------------------------------------------- #
# wrapper
# --------------------------------------------------------------------------- #
def cont_loss(a, b, tau=0.07):
    """Pallas TPU implementation of ContLoss.forward(a, b)."""
    assert a.shape == b.shape and a.ndim == 2
    n, d = a.shape
    two_n = 2 * n

    # Lane-align the feature dim (zeros change neither norms nor dot products).
    d_pad = _round_up(d, LANE)
    a32 = a.astype(jnp.float32)
    b32 = b.astype(jnp.float32)
    if d_pad != d:
        a32 = jnp.pad(a32, ((0, 0), (0, d_pad - d)))
        b32 = jnp.pad(b32, ((0, 0), (0, d_pad - d)))

    # ---- prep pass (tiled over rows of N) -----------------------------------
    tp = min(128, _round_up(n, 16))
    n_prep = _round_up(n, tp)
    if n_prep != n:
        a32 = jnp.pad(a32, ((0, n_prep - n), (0, 0)))
        b32 = jnp.pad(b32, ((0, n_prep - n), (0, 0)))

    a_cap, b_cap, cross = pl.pallas_call(
        functools.partial(_prep_kernel, inv_tau=float(1.0 / tau),
                          inv_sqrt_tau=float(1.0 / math.sqrt(tau))),
        grid=(n_prep // tp,),
        in_specs=[pl.BlockSpec((tp, d_pad), lambda i: (i, 0)),
                  pl.BlockSpec((tp, d_pad), lambda i: (i, 0))],
        out_specs=[pl.BlockSpec((tp, d_pad), lambda i: (i, 0)),
                   pl.BlockSpec((tp, d_pad), lambda i: (i, 0)),
                   pl.BlockSpec((tp, 1), lambda i: (i, 0))],
        out_shape=(jax.ShapeDtypeStruct((n_prep, d_pad), jnp.bfloat16),
                   jax.ShapeDtypeStruct((n_prep, d_pad), jnp.bfloat16),
                   jax.ShapeDtypeStruct((n_prep, 1), jnp.float32)),
        compiler_params=pltpu.CompilerParams(
            dimension_semantics=("parallel",)),
    )(a32, b32)
    a_cap, b_cap, cross = a_cap[:n], b_cap[:n], cross[:n]

    # cat([a_cap, b_cap]) rows; the cross (log-numerator) term repeats.
    ab = jnp.concatenate([a_cap, b_cap], axis=0)           # (2N, D_pad) bf16
    cross2 = jnp.concatenate([cross, cross], axis=0)       # (2N, 1)     f32

    # ---- main pass: tiled exp-sum over the (2N, 2N) similarity ---------------
    # 256-wide tiles fill v6e/v7x's 2x256 MXU (and are 128-multiples for v5e);
    # fall back to 128 for small/unaligned 2N.  Padded *columns* are masked in
    # the kernel; padded *rows* are dropped before the mean.
    tile = 256 if (two_n >= 256 and two_n % 256 == 0) else 128
    two_n_pad = _round_up(two_n, tile)
    if two_n_pad != two_n:
        ab = jnp.pad(ab, ((0, two_n_pad - two_n), (0, 0)))
        cross2 = jnp.pad(cross2, ((0, two_n_pad - two_n), (0, 0)))

    g = two_n_pad // tile
    per_row = pl.pallas_call(
        functools.partial(_sim_loss_kernel, tile=tile, valid_cols=two_n),
        grid=(g, g),
        in_specs=[pl.BlockSpec((tile, d_pad), lambda i, j: (i, 0)),  # row blk
                  pl.BlockSpec((tile, d_pad), lambda i, j: (j, 0)),  # col blk
                  pl.BlockSpec((tile, 1), lambda i, j: (i, 0))],     # cross
        out_specs=pl.BlockSpec((tile, 1), lambda i, j: (i, 0)),
        out_shape=jax.ShapeDtypeStruct((two_n_pad, 1), jnp.float32),
        scratch_shapes=[pltpu.VMEM((tile, 1), jnp.float32)],
        compiler_params=pltpu.CompilerParams(
            dimension_semantics=("parallel", "arbitrary")),
    )(ab, ab, cross2)

    # Final mean over the 2N real rows (tiny O(N) reduce; hot path is in-kernel).
    return jnp.mean(per_row[:two_n, 0])


def _cont_loss_ref(a, b, tau=0.07):
    """Pure-JAX reference mirroring the PyTorch module, for validation."""
    a = a.astype(jnp.float32)
    b = b.astype(jnp.float32)
    a_cap = a / jnp.linalg.norm(a, axis=1, keepdims=True)
    b_cap = b / jnp.linalg.norm(b, axis=1, keepdims=True)
    ab = jnp.concatenate([a_cap, b_cap], axis=0)
    ba = jnp.concatenate([b_cap, a_cap], axis=0)
    sim = ab @ ab.T
    exp_sim = jnp.exp(sim / tau)
    sum_rows = jnp.sum(exp_sim, axis=1)
    diag = jnp.diag(exp_sim)
    cos = jnp.sum(ab * ba, axis=1) / (
        jnp.linalg.norm(ab, axis=1) * jnp.linalg.norm(ba, axis=1))
    numerators = jnp.exp(cos / tau)
    denominators = sum_rows - diag
    return jnp.mean(-jnp.log(numerators / denominators))


if __name__ == "__main__":
    key = jax.random.PRNGKey(0)
    ka, kb = jax.random.split(key)
    N, D = 16, 32
    a = jax.random.normal(ka, (N, D), dtype=jnp.float32)
    b = jax.random.normal(kb, (N, D), dtype=jnp.float32)

    loss = cont_loss(a, b, tau=0.07)
    loss = jax.block_until_ready(loss)

    ref = _cont_loss_ref(a, b, tau=0.07)
    # bf16 MXU operands (f32 accumulation) -> ~1e-3 relative deviation expected.
    assert jnp.allclose(loss, ref, rtol=1e-2, atol=1e-2), (loss, ref)
    print("KERNEL_OK")
</pallas_src>

<mosaic_0001>
module attributes {stable_mosaic.version = 11 : i64} {
  func.func @_prep_kernel(%arg0: i32, %arg1: memref<16x128xf32, #tpu.memory_space<vmem>>, %arg2: memref<16x128xf32, #tpu.memory_space<vmem>>, %arg3: memref<16x128xbf16, #tpu.memory_space<vmem>>, %arg4: memref<16x128xbf16, #tpu.memory_space<vmem>>, %arg5: memref<16x1xf32, #tpu.memory_space<vmem>>) attributes {dimension_semantics = [#tpu.dimension_semantics<parallel>], iteration_bounds = array<i64: 1>, scalar_prefetch = 0 : i64, scratch_operands = 0 : i64, tpu.core_type = #tpu.core_type<tc>, window_params = [{transform_indices = @transform_0, window_bounds = array<i64: 16, 128>}, {transform_indices = @transform_1, window_bounds = array<i64: 16, 128>}, {transform_indices = @transform_2, window_bounds = array<i64: 16, 128>}, {transform_indices = @transform_3, window_bounds = array<i64: 16, 128>}, {transform_indices = @transform_4, window_bounds = array<i64: 16, 1>}]} {
    %c0 = arith.constant 0 : index
    %c0_0 = arith.constant 0 : index
    %0 = vector.load %arg1[%c0, %c0_0] : memref<16x128xf32, #tpu.memory_space<vmem>>, vector<16x128xf32>
    %c0_1 = arith.constant 0 : index
    %c0_2 = arith.constant 0 : index
    %1 = vector.load %arg2[%c0_1, %c0_2] : memref<16x128xf32, #tpu.memory_space<vmem>>, vector<16x128xf32>
    %2 = arith.mulf %0, %0 : vector<16x128xf32>
    %cst = arith.constant dense<0.000000e+00> : vector<16xf32>
    %3 = vector.multi_reduction <add>, %2, %cst [1] : vector<16x128xf32> to vector<16xf32>
    %4 = vector.shape_cast %3 : vector<16xf32> to vector<16x1xf32>
    %cst_3 = arith.constant 9.99999996E-13 : f32
    %5 = vector.broadcast %cst_3 : f32 to vector<16x1xf32>
    %6 = arith.maximumf %4, %5 : vector<16x1xf32>
    %7 = math.rsqrt %6 : vector<16x1xf32>
    %8 = arith.mulf %1, %1 : vector<16x128xf32>
    %cst_4 = arith.constant dense<0.000000e+00> : vector<16xf32>
    %9 = vector.multi_reduction <add>, %8, %cst_4 [1] : vector<16x128xf32> to vector<16xf32>
    %10 = vector.shape_cast %9 : vector<16xf32> to vector<16x1xf32>
    %cst_5 = arith.constant 9.99999996E-13 : f32
    %11 = vector.broadcast %cst_5 : f32 to vector<16x1xf32>
    %12 = arith.maximumf %10, %11 : vector<16x1xf32>
    %13 = math.rsqrt %12 : vector<16x1xf32>
    %14 = vector.broadcast %7 : vector<16x1xf32> to vector<16x128xf32>
    %15 = arith.mulf %0, %14 : vector<16x128xf32>
    %16 = vector.broadcast %13 : vector<16x1xf32> to vector<16x128xf32>
    %17 = arith.mulf %1, %16 : vector<16x128xf32>
    %18 = arith.mulf %15, %17 : vector<16x128xf32>
    %cst_6 = arith.constant dense<0.000000e+00> : vector<16xf32>
    %19 = vector.multi_reduction <add>, %18, %cst_6 [1] : vector<16x128xf32> to vector<16xf32>
    %20 = vector.shape_cast %19 : vector<16xf32> to vector<16x1xf32>
    %cst_7 = arith.constant 14.2857141 : f32
    %21 = vector.broadcast %cst_7 : f32 to vector<16x1xf32>
    %22 = arith.mulf %20, %21 : vector<16x1xf32>
    %c0_8 = arith.constant 0 : index
    %c0_9 = arith.constant 0 : index
    %23 = vector.load %arg5[%c0_8, %c0_9] : memref<16x1xf32, #tpu.memory_space<vmem>>, vector<16x1xf32>
    tpu.vector_store %arg5[%c0_8, %c0_9], %22 {strides = array<i32>} : memref<16x1xf32, #tpu.memory_space<vmem>>, vector<16x1xf32>,
    %cst_10 = arith.constant 3.77964473 : f32
    %24 = vector.broadcast %cst_10 : f32 to vector<16x128xf32>
    %25 = arith.mulf %15, %24 : vector<16x128xf32>
    %26 = arith.truncf %25 : vector<16x128xf32> to vector<16x128xbf16>
    %c0_11 = arith.constant 0 : index
    %c0_12 = arith.constant 0 : index
    %27 = vector.load %arg3[%c0_11, %c0_12] : memref<16x128xbf16, #tpu.memory_space<vmem>>, vector<16x128xbf16>
    tpu.vector_store %arg3[%c0_11, %c0_12], %26 {strides = array<i32>} : memref<16x128xbf16, #tpu.memory_space<vmem>>, vector<16x128xbf16>,
    %cst_13 = arith.constant 3.77964473 : f32
    %28 = vector.broadcast %cst_13 : f32 to vector<16x128xf32>
    %29 = arith.mulf %17, %28 : vector<16x128xf32>
    %30 = arith.truncf %29 : vector<16x128xf32> to vector<16x128xbf16>
    %c0_14 = arith.constant 0 : index
    %c0_15 = arith.constant 0 : index
    %31 = vector.load %arg4[%c0_14, %c0_15] : memref<16x128xbf16, #tpu.memory_space<vmem>>, vector<16x128xbf16>
    tpu.vector_store %arg4[%c0_14, %c0_15], %30 {strides = array<i32>} : memref<16x128xbf16, #tpu.memory_space<vmem>>, vector<16x128xbf16>,
    return
  }
  func.func @transform_0(%arg0: i32) -> (i32, i32) {
    %c0_i32 = arith.constant 0 : i32
    %c0_i32_0 = arith.constant 0 : i32
    return %arg0, %c0_i32 : i32, i32
  }
  func.func @transform_1(%arg0: i32) -> (i32, i32) {
    %c0_i32 = arith.constant 0 : i32
    %c0_i32_0 = arith.constant 0 : i32
    return %arg0, %c0_i32 : i32, i32
  }
  func.func @transform_2(%arg0: i32) -> (i32, i32) {
    %c0_i32 = arith.constant 0 : i32
    %c0_i32_0 = arith.constant 0 : i32
    return %arg0, %c0_i32 : i32, i32
  }
  func.func @transform_3(%arg0: i32) -> (i32, i32) {
    %c0_i32 = arith.constant 0 : i32
    %c0_i32_0 = arith.constant 0 : i32
    return %arg0, %c0_i32 : i32, i32
  }
  func.func @transform_4(%arg0: i32) -> (i32, i32) {
    %c0_i32 = arith.constant 0 : i32
    %c0_i32_0 = arith.constant 0 : i32
    return %arg0, %c0_i32 : i32, i32
  }
}

</mosaic_0001>

<llo_original>
// kernel: tpu_custom_call.1
$region0: #{tpu_custom_call.1}
  #allocation0 [shape = 'u32[]', space=smem, size = 0x4, offset = 0x4, fixed_abs, tag = 'smem constant byte address 0x4 - core index']
  #allocation1 [shape = 'u32[72,128]{1,0:T(1,128)}', space=vmem, size = 0x9000, scoped, tag = 'internal scratch']
  %s0 = inlined_call_operand.hbm [shape: f32[16,128], index: 0, kind: input, shape index: {}]
  %s1 = inlined_call_operand.hbm [shape: f32[16,128], index: 1, kind: input, shape index: {}]
  %s2 = inlined_call_operand.hbm [shape: bf16[16,128], index: 2, kind: output, shape index: {0}]
  %s3 = inlined_call_operand.hbm [shape: bf16[16,128], index: 3, kind: output, shape index: {1}]
  %s4 = inlined_call_operand.vmem [shape: f32[16,1], index: 4, kind: output, shape index: {2}]
  %5 = xla_tuple %s2, %s3, %s4
  %s6 = sld [smem:[#allocation0]]
  $region42: #{tpu_custom_call.1} parent=0
    _
  %s8 = ssub.s32 1, %s6
  %s9 = scalar_select 0, %s8, %s6
  $region1: #{tpu_custom_call.1} parent=0
    #allocation2 [shape = 'u8[8192]{0}', space=vmem, size = 0x2000, scoped, tag = 'input window, operand 0, single buffered']
    #allocation3 [shape = 's32[1]{0}', space=sflag, size = 0x4, scoped, tag = 'scoped memory for tpu_custom_call.1']
    #allocation4 [shape = 's32[1]{0}', space=sflag, size = 0x4, scoped, tag = 'scoped memory for tpu_custom_call.1']
    #allocation5 [shape = 'u8[8192]{0}', space=vmem, size = 0x2000, scoped, tag = 'input window, operand 1, single buffered']
    #allocation6 [shape = 's32[1]{0}', space=sflag, size = 0x4, scoped, tag = 'scoped memory for tpu_custom_call.1']
    #allocation7 [shape = 'u8[4096]{0}', space=vmem, size = 0x1000, scoped, tag = 'output window, operand 0, single buffered']
    #allocation8 [shape = 'u8[4096]{0}', space=vmem, size = 0x1000, scoped, tag = 'output window, operand 1, single buffered']
    #allocation9 [shape = 's32[1]{0}', space=sflag, size = 0x4, scoped, tag = 'scoped memory for tpu_custom_call.1']
    %10 = vsyncpa [#allocation3], 0
    %11 = vsyncpa [#allocation6], 0
    %12 = vsyncpa [#allocation4], 0
    %13 = vsyncpa [#allocation9], 0
    // Predicated region
    $region2: #{tpu_custom_call.1} parent=1 // pred_check
      _
    $region3: #{tpu_custom_call.1} parent=1 // pred_check_branch
      %15 = sbr.rel (0) target = $region5
    $region4: #{tpu_custom_call.1} parent=1 // pred_region
      %17 = vsyncadd [#allocation3], 0
      %s18 = sshll.u32 %s0, 4
      %s19 = int_to_ptr.hbm [resolvable:$true] %s18
      %s20 = sshll.u32 [#allocation2], 4
      %s21 = int_to_ptr.vmem [resolvable:$true] %s20
      %26 = dma.hbm_to_vmem [thread:$0]  %s19, 256, %s21, [#allocation3], 128, 128, 8
    $region5: #{tpu_custom_call.1} parent=1 // pred_fallthru
      _
    // Predicated region
    $region6: #{tpu_custom_call.1} parent=1 // pred_check
      _
    $region7: #{tpu_custom_call.1} parent=1 // pred_check_branch
      %28 = sbr.rel (0) target = $region9
    $region8: #{tpu_custom_call.1} parent=1 // pred_region
      %30 = vsyncadd [#allocation6], 0
      %s31 = sshll.u32 %s1, 4
      %s32 = int_to_ptr.hbm [resolvable:$true] %s31
      %s33 = sshll.u32 [#allocation5], 4
      %s34 = int_to_ptr.vmem [resolvable:$true] %s33
      %39 = dma.hbm_to_vmem [thread:$0]  %s32, 256, %s34, [#allocation6], 128, 128, 8
    $region9: #{tpu_custom_call.1} parent=1 // pred_fallthru
      _
    // Predicated region
    $region10: #{tpu_custom_call.1} parent=1 // pred_check
      _
    $region11: #{tpu_custom_call.1} parent=1 // pred_check_branch
      %41 = sbr.rel (0) target = $region13
    $region12: #{tpu_custom_call.1} parent=1 // pred_region
      %43 = dma.done [#allocation3], 256
    $region13: #{tpu_custom_call.1} parent=1 // pred_fallthru
      _
    // Predicated region
    $region14: #{tpu_custom_call.1} parent=1 // pred_check
      _
    $region15: #{tpu_custom_call.1} parent=1 // pred_check_branch
      %45 = sbr.rel (0) target = $region17
    $region16: #{tpu_custom_call.1} parent=1 // pred_region
      %47 = dma.done [#allocation6], 256
    $region17: #{tpu_custom_call.1} parent=1 // pred_fallthru
      _
    %v48 = vld [vmem:[#allocation2] sm:$0xff]
    %v49 = vld [vmem:[#allocation2 + $0x8] sm:$0xff]
    %v50 = vld [vmem:[#allocation5] sm:$0xff]
    %v51 = vld [vmem:[#allocation5 + $0x8] sm:$0xff]
    %v52 = vmul.f32 %v48, %v48
    %v53 = vmul.f32 %v49, %v49
    %54 = vadd.xlane.f32.xlu0 %v52
    %v55 = vpop.xlane.xlu0 %54
    %56 = vadd.xlane.f32.xlu0 %v53
    %v57 = vpop.xlane.xlu0 %56
    %v58 = vmax.f32 %v55, 1e-12
    %v59 = vmax.f32 %v57, 1e-12
    %v60 = vrsqrt.pop %v58
    %v61 = vmul.f32 %v60, %v58
    %v62 = vmul.f32 %v61, %v60
    %v63 = vmul.f32 0.5, %v62
    %v64 = vsub.f32 1.5, %v63
    %v65 = vmul.f32 %v60, %v64
    %vm66 = vweird.f32 %v58
    %vm67 = vweird.f32 %v60
    %vm68 = vmor %vm66, %vm67
    %v69 = vsel %vm68, %v60, %v65
    %v70 = vrsqrt.pop %v59
    %v71 = vmul.f32 %v70, %v59
    %v72 = vmul.f32 %v71, %v70
    %v73 = vmul.f32 0.5, %v72
    %v74 = vsub.f32 1.5, %v73
    %v75 = vmul.f32 %v70, %v74
    %vm76 = vweird.f32 %v59
    %vm77 = vweird.f32 %v70
    %vm78 = vmor %vm76, %vm77
    %v79 = vsel %vm78, %v70, %v75
    %v80 = vmul.f32 %v50, %v50
    %v81 = vmul.f32 %v51, %v51
    %82 = vadd.xlane.f32.xlu0 %v80
    %v83 = vpop.xlane.xlu0 %82
    %84 = vadd.xlane.f32.xlu0 %v81
    %v85 = vpop.xlane.xlu0 %84
    %v86 = vmax.f32 %v83, 1e-12
    %v87 = vmax.f32 %v85, 1e-12
    %v88 = vrsqrt.pop %v86
    %v89 = vmul.f32 %v88, %v86
    %v90 = vmul.f32 %v89, %v88
    %v91 = vmul.f32 0.5, %v90
    %v92 = vsub.f32 1.5, %v91
    %v93 = vmul.f32 %v88, %v92
    %vm94 = vweird.f32 %v86
    %vm95 = vweird.f32 %v88
    %vm96 = vmor %vm94, %vm95
    %v97 = vsel %vm96, %v88, %v93
    %v98 = vrsqrt.pop %v87
    %v99 = vmul.f32 %v98, %v87
    %v100 = vmul.f32 %v99, %v98
    %v101 = vmul.f32 0.5, %v100
    %v102 = vsub.f32 1.5, %v101
    %v103 = vmul.f32 %v98, %v102
    %vm104 = vweird.f32 %v87
    %vm105 = vweird.f32 %v98
    %vm106 = vmor %vm104, %vm105
    %v107 = vsel %vm106, %v98, %v103
    %v108 = vmul.f32 %v48, %v69
    %v109 = vmul.f32 %v49, %v79
    %v110 = vmul.f32 %v50, %v97
    %v111 = vmul.f32 %v51, %v107
    %v112 = vmul.f32 %v108, %v110
    %v113 = vmul.f32 %v109, %v111
    %114 = vadd.xlane.f32.xlu0 %v112
    %v115 = vpop.xlane.xlu0 %114
    %116 = vadd.xlane.f32.xlu0 %v113
    %v117 = vpop.xlane.xlu0 %116
    %v118 = vmul.f32 %v115, 14.285714
    %v119 = vmul.f32 %v117, 14.285714
    %vm120 = vcmask 7168
    %121 = vst.msk [vmem:[%s4] sm:$0xff] %vm120, %v118
    %122 = vst.msk [vmem:[%s4 + $0x8] sm:$0xff] %vm120, %v119
    %v123 = vmul.f32 %v108, 3.7796447
    %v124 = vmul.f32 %v109, 3.7796447
    %v125 = vpack.c.bf16 %v123, %v123
    %v126 = vpack.c.bf16 %v124, %v124
    %127 = vst [vmem:[#allocation7] sm:$0xf] %v125
    %128 = vst [vmem:[#allocation7 + $0x4] sm:$0xf] %v126
    %v129 = vmul.f32 %v110, 3.7796447
    %v130 = vmul.f32 %v111, 3.7796447
    %v131 = vpack.c.bf16 %v129, %v129
    %v132 = vpack.c.bf16 %v130, %v130
    %133 = vst [vmem:[#allocation8] sm:$0xf] %v131
    %134 = vst [vmem:[#allocation8 + $0x4] sm:$0xf] %v132
    // Predicated region
    $region18: #{tpu_custom_call.1} parent=1 // pred_check
      _
    $region19: #{tpu_custom_call.1} parent=1 // pred_check_branch
      %136 = sbr.rel (0) target = $region21
    $region20: #{tpu_custom_call.1} parent=1 // pred_region
      %138 = vsyncadd [#allocation4], 0
      %s139 = sshll.u32 [#allocation7], 4
      %s140 = int_to_ptr.vmem [resolvable:$true] %s139
      %s141 = sshll.u32 %s2, 4
      %s142 = int_to_ptr.hbm [resolvable:$true] %s141
      %147 = dma.vmem_to_hbm [thread:$0]  %s140, 128, %s142, [#allocation4], 64, 64, 4
    $region21: #{tpu_custom_call.1} parent=1 // pred_fallthru
      _
    // Predicated region
    $region22: #{tpu_custom_call.1} parent=1 // pred_check
      _
    $region23: #{tpu_custom_call.1} parent=1 // pred_check_branch
      %149 = sbr.rel (0) target = $region25
    $region24: #{tpu_custom_call.1} parent=1 // pred_region
      %151 = vsyncadd [#allocation9], 0
      %s152 = sshll.u32 [#allocation8], 4
      %s153 = int_to_ptr.vmem [resolvable:$true] %s152
      %s154 = sshll.u32 %s3, 4
      %s155 = int_to_ptr.hbm [resolvable:$true] %s154
      %160 = dma.vmem_to_hbm [thread:$0]  %s153, 128, %s155, [#allocation9], 64, 64, 4
    $region25: #{tpu_custom_call.1} parent=1 // pred_fallthru
      _
    // Predicated region
    $region26: #{tpu_custom_call.1} parent=1 // pred_check
      _
    $region27: #{tpu_custom_call.1} parent=1 // pred_check_branch
      %162 = sbr.rel (0) target = $region29
    $region28: #{tpu_custom_call.1} parent=1 // pred_region
      _
    $region29: #{tpu_custom_call.1} parent=1 // pred_fallthru
      _
    // Predicated region
    $region30: #{tpu_custom_call.1} parent=1 // pred_check
      _
    $region31: #{tpu_custom_call.1} parent=1 // pred_check_branch
      %164 = sbr.rel (0) target = $region33
    $region32: #{tpu_custom_call.1} parent=1 // pred_region
      %166 = dma.done [#allocation4], 128
    $region33: #{tpu_custom_call.1} parent=1 // pred_fallthru
      _
    // Predicated region
    $region34: #{tpu_custom_call.1} parent=1 // pred_check
      _
    $region35: #{tpu_custom_call.1} parent=1 // pred_check_branch
      %168 = sbr.rel (0) target = $region37
    $region36: #{tpu_custom_call.1} parent=1 // pred_region
      %170 = dma.done [#allocation9], 128
    $region37: #{tpu_custom_call.1} parent=1 // pred_fallthru
      _
    // Predicated region
    $region38: #{tpu_custom_call.1} parent=1 // pred_check
      _
    $region39: #{tpu_custom_call.1} parent=1 // pred_check_branch
      %172 = sbr.rel (0) target = $region41
    $region40: #{tpu_custom_call.1} parent=1 // pred_region
      _
    $region41: #{tpu_custom_call.1} parent=1 // pred_fallthru
      _
    %173 = vsyncpa [#allocation3], 1
    %174 = vsyncpa [#allocation6], 1
    %175 = vsyncpa [#allocation4], 1
    %176 = vsyncpa [#allocation9], 1

</llo_original>
